<compile_context>
chip_gen: v5e
topology: v5e:2x2
jax: 0.10.0
libtpu: 0.0.40
codegen_flags: <defaults>
</compile_context>

<pallas_src>
import jax
import jax.numpy as jnp
from jax.experimental import pallas as pl
from jax.experimental.pallas import tpu as pltpu


# ---------------------------------------------------------------------------
# Score kernel: fixed 3x3 valid conv -> |.| -> sum over spatial (flat layout).
# ---------------------------------------------------------------------------
def _advance(y, d):
    """y shifted forward by static d along the last (flat/lane) axis.

    result[:, f] = y[:, (f + d) % N]; wrapped positions are don't-care (they
    are masked out downstream).  Static slice + concat lowers to lane rotates
    on Mosaic and is fully supported by interpret mode.
    """
    if d == 0:
        return y
    return jnp.concatenate([y[:, d:], y[:, :d]], axis=1)


def _make_score_kernel(H, W):
    def kernel(x_ref, p_ref):
        # x_ref: (1, TC, H*W) VMEM tile; p_ref: (1, 1, TC) output tile.
        x = x_ref[0].astype(jnp.float32)            # (TC, H*W)

        # Column taps: lane shifts by 1 and 2.
        x1 = _advance(x, 1)                         # x[i, j+1]
        e02 = x + _advance(x, 2)                    # x[i, j] + x[i, j+2]

        # Per-row partial sums of the curvature filter
        #   top/bottom rows: (-1/16, 5/16, -1/16),  middle row: (5/16, -1, 5/16)
        a_row = 0.3125 * x1 - 0.0625 * e02
        b_row = 0.3125 * e02 - x1

        # Row taps: lane shifts by W and 2W on the flat axis -> only 3 shifted
        # terms (vs. 6 unaligned sublane slices in the previous version).
        acc = a_row + _advance(a_row, 2 * W) + _advance(b_row, W)

        # Keep only valid window top-left positions (mask wrapped cols / rows),
        # then |.| and a single cross-lane reduction per channel.
        f = jax.lax.broadcasted_iota(jnp.int32, acc.shape, 1)
        valid = ((f % W) < (W - 2)) & (f < (H - 2) * W)
        mag = jnp.where(valid, jnp.abs(acc), 0.0)
        p_ref[...] = jnp.sum(mag, axis=-1)[None, None, :]   # (1, 1, TC)
    return kernel


# ---------------------------------------------------------------------------
# Gather kernel: copy the top-k channels (channel index read from SMEM).
# ---------------------------------------------------------------------------
def _gather_kernel(idx_ref, x_ref, o_ref):
    del idx_ref  # consumed by the index_map (scalar prefetch), not the body
    o_ref[...] = x_ref[...]


# ---------------------------------------------------------------------------
# Sizing helpers (generation-gated VMEM budget).
# ---------------------------------------------------------------------------
def _vmem_capacity_bytes():
    try:
        info = pltpu.get_tpu_info()
        cap = getattr(info, "vmem_capacity_bytes", None)
        if cap:
            return int(cap)
    except Exception:
        pass
    return 64 << 20  # conservative default (v7x per-core VMEM)


def _pick_channel_tile(C, HW, budget_bytes):
    """Largest channel tile dividing C (lane-tiling friendly: multiple of 128
    or all of C) whose f32 working tile stays within budget."""
    per_chan = HW * 4  # budget against the f32 temporaries
    if C * per_chan <= budget_bytes:
        return C
    best = 0
    t = 128
    while t < C:
        if C % t == 0 and t * per_chan <= budget_bytes:
            best = t
        t += 128
    if best:
        return best
    return 128 if C % 128 == 0 else C


def _maybe_buffered_spec(block_shape, index_map, buffers):
    """BlockSpec with deeper pipelining when this JAX version supports it."""
    buffered = getattr(pl, "Buffered", None)
    if buffered is not None:
        try:
            return pl.BlockSpec(block_shape, index_map,
                                pipeline_mode=buffered(buffers))
        except TypeError:
            pass
    return pl.BlockSpec(block_shape, index_map)


# ---------------------------------------------------------------------------
# Forward
# ---------------------------------------------------------------------------
def cnn_qulv_forward(x, ratio):
    """x: (B, C, H, W); ratio: python float. Returns (B, k, H, W) in x.dtype."""
    B, C, H, W = x.shape
    HW = H * W
    xf = x.reshape(B, C, HW)                 # free metadata reshape (lane-dense)

    vmem_cap = _vmem_capacity_bytes()
    tile_budget = (8 << 20) if vmem_cap >= (128 << 20) else (4 << 20)
    tc = _pick_channel_tile(C, HW, tile_budget)
    n_ct = C // tc

    itemsize = jnp.dtype(x.dtype).itemsize
    in_tile_bytes = tc * HW * itemsize
    # Live set: double-buffered input tile + ~7 f32-tile temporaries + slack.
    live_bytes = 2 * in_tile_bytes + 7 * tc * HW * 4 + (1 << 20)
    vmem_limit = int(min(max(live_bytes, 32 << 20), vmem_cap * 3 // 4))

    p = pl.pallas_call(
        _make_score_kernel(H, W),
        out_shape=jax.ShapeDtypeStruct((B, 1, C), jnp.float32),
        grid_spec=pltpu.PrefetchScalarGridSpec(
            num_scalar_prefetch=0,
            grid=(B, n_ct),
            in_specs=[pl.BlockSpec((1, tc, HW), lambda b, c: (b, c, 0))],
            out_specs=pl.BlockSpec((1, 1, tc), lambda b, c: (b, 0, c)),
        ),
        compiler_params=pltpu.CompilerParams(
            dimension_semantics=("parallel", "parallel"),
            vmem_limit_bytes=vmem_limit,
        ),
    )(xf).reshape(B, C)

    # Matches torch's `int(ratio * C)` truncation.
    k = int(ratio * C)
    if k == 0:
        return jnp.zeros((B, 0, H, W), x.dtype)

    # TODO(synk): top-k selection itself (a sort) has no clean Pallas TPU
    # primitive; done in plain JAX (descending scores like torch.topk; ordering
    # of exact ties may differ).
    _, idx = jax.lax.top_k(p, k)
    idx = idx.astype(jnp.int32)

    # Channel gather: scalar-prefetch-indexed copy of lane-dense (1, 1, H*W)
    # channel slabs in the native dtype.  Both grid axes are independent ->
    # "parallel" so v7x can shard the k axis across its two TensorCores.
    selected = pl.pallas_call(
        _gather_kernel,
        out_shape=jax.ShapeDtypeStruct((B, k, HW), x.dtype),
        grid_spec=pltpu.PrefetchScalarGridSpec(
            num_scalar_prefetch=1,
            grid=(B, k),
            in_specs=[
                _maybe_buffered_spec(
                    (1, 1, HW),
                    lambda b, j, idx_ref: (b, idx_ref[b, j], 0),
                    buffers=4),
            ],
            out_specs=pl.BlockSpec((1, 1, HW),
                                   lambda b, j, idx_ref: (b, j, 0)),
        ),
        compiler_params=pltpu.CompilerParams(
            dimension_semantics=("parallel", "parallel")),
    )(idx, xf)
    return selected.reshape(B, k, H, W)


# ---------------------------------------------------------------------------
# Pure-JAX reference (correctness self-check at small shapes).
# ---------------------------------------------------------------------------
def _reference(x, ratio):
    w = jnp.array(
        [[-1.0 / 16.0, 5.0 / 16.0, -1.0 / 16.0],
         [ 5.0 / 16.0, -1.0,        5.0 / 16.0],
         [-1.0 / 16.0, 5.0 / 16.0, -1.0 / 16.0]], jnp.float32)
    B, C, H, W = x.shape
    xr = x.reshape(B * C, 1, H, W).astype(jnp.float32)
    out = jax.lax.conv_general_dilated(xr, w[None, None, :, :],
                                       window_strides=(1, 1), padding="VALID")
    p = jnp.sum(jnp.abs(out), axis=(-1, -2)).reshape(B, C)
    _, idx = jax.lax.top_k(p, int(ratio * C))
    return jnp.take_along_axis(x, idx[:, :, None, None], axis=1)


if __name__ == "__main__":
    key = jax.random.PRNGKey(0)
    B, C, H, W = 2, 4, 16, 16
    ratio = 0.5

    x = jax.random.normal(key, (B, C, H, W), dtype=jnp.float32)

    out = jax.block_until_ready(cnn_qulv_forward(x, ratio))
    assert out.shape == (B, int(ratio * C), H, W), out.shape
    assert out.dtype == x.dtype

    ref = jax.block_until_ready(_reference(x, ratio))
    assert jnp.allclose(out, ref, rtol=1e-4, atol=1e-4), float(
        jnp.max(jnp.abs(out - ref)))

    print("KERNEL_OK")
</pallas_src>

<mosaic_0001>
module attributes {stable_mosaic.version = 11 : i64} {
  func.func @kernel(%arg0: i32, %arg1: i32, %arg2: memref<1x4x256xf32, #tpu.memory_space<vmem>>, %arg3: memref<1x1x4xf32, #tpu.memory_space<vmem>>) attributes {dimension_semantics = [#tpu.dimension_semantics<parallel>, #tpu.dimension_semantics<parallel>], iteration_bounds = array<i64: 2, 1>, scalar_prefetch = 0 : i64, scratch_operands = 0 : i64, tpu.core_type = #tpu.core_type<tc>, window_params = [{transform_indices = @transform_0, window_bounds = array<i64: 1, 4, 256>}, {transform_indices = @transform_1, window_bounds = array<i64: 1, 1, 4>}]} {
    %c0 = arith.constant 0 : index
    %c0_0 = arith.constant 0 : index
    %c0_1 = arith.constant 0 : index
    %0 = vector.load %arg2[%c0, %c0_0, %c0_1] : memref<1x4x256xf32, #tpu.memory_space<vmem>>, vector<1x4x256xf32>
    %1 = vector.shape_cast %0 : vector<1x4x256xf32> to vector<4x256xf32>
    %2 = vector.extract_strided_slice %1 {offsets = [0, 1], sizes = [4, 255], strides = [1, 1]} : vector<4x256xf32> to vector<4x255xf32>
    %3 = vector.extract_strided_slice %1 {offsets = [0, 0], sizes = [4, 1], strides = [1, 1]} : vector<4x256xf32> to vector<4x1xf32>
    %4 = tpu.concatenate %2, %3 in 1 : vector<4x255xf32>, vector<4x1xf32> -> vector<4x256xf32>
    %5 = vector.extract_strided_slice %1 {offsets = [0, 2], sizes = [4, 254], strides = [1, 1]} : vector<4x256xf32> to vector<4x254xf32>
    %6 = vector.extract_strided_slice %1 {offsets = [0, 0], sizes = [4, 2], strides = [1, 1]} : vector<4x256xf32> to vector<4x2xf32>
    %7 = tpu.concatenate %5, %6 in 1 : vector<4x254xf32>, vector<4x2xf32> -> vector<4x256xf32>
    %8 = arith.addf %1, %7 : vector<4x256xf32>
    %cst = arith.constant 3.125000e-01 : f32
    %9 = vector.broadcast %cst : f32 to vector<4x256xf32>
    %10 = arith.mulf %9, %4 : vector<4x256xf32>
    %cst_2 = arith.constant 6.250000e-02 : f32
    %11 = vector.broadcast %cst_2 : f32 to vector<4x256xf32>
    %12 = arith.mulf %11, %8 : vector<4x256xf32>
    %13 = arith.subf %10, %12 : vector<4x256xf32>
    %cst_3 = arith.constant 3.125000e-01 : f32
    %14 = vector.broadcast %cst_3 : f32 to vector<4x256xf32>
    %15 = arith.mulf %14, %8 : vector<4x256xf32>
    %16 = arith.subf %15, %4 : vector<4x256xf32>
    %17 = vector.extract_strided_slice %13 {offsets = [0, 32], sizes = [4, 224], strides = [1, 1]} : vector<4x256xf32> to vector<4x224xf32>
    %18 = vector.extract_strided_slice %13 {offsets = [0, 0], sizes = [4, 32], strides = [1, 1]} : vector<4x256xf32> to vector<4x32xf32>
    %19 = tpu.concatenate %17, %18 in 1 : vector<4x224xf32>, vector<4x32xf32> -> vector<4x256xf32>
    %20 = arith.addf %13, %19 : vector<4x256xf32>
    %21 = vector.extract_strided_slice %16 {offsets = [0, 16], sizes = [4, 240], strides = [1, 1]} : vector<4x256xf32> to vector<4x240xf32>
    %22 = vector.extract_strided_slice %16 {offsets = [0, 0], sizes = [4, 16], strides = [1, 1]} : vector<4x256xf32> to vector<4x16xf32>
    %23 = tpu.concatenate %21, %22 in 1 : vector<4x240xf32>, vector<4x16xf32> -> vector<4x256xf32>
    %24 = arith.addf %20, %23 : vector<4x256xf32>
    %25 = tpu.iota {dimensions = array<i32: 1>} : vector<4x256xi32>
    %c16_i32 = arith.constant 16 : i32
    %c0_i32 = arith.constant 0 : i32
    %26 = arith.cmpi eq, %c16_i32, %c0_i32 : i32
    %c1_i32 = arith.constant 1 : i32
    %27 = arith.select %26, %c1_i32, %c16_i32 : i32
    %28 = vector.broadcast %27 : i32 to vector<4x256xi32>
    %29 = arith.remsi %25, %28 : vector<4x256xi32>
    %c0_i32_4 = arith.constant 0 : i32
    %30 = vector.broadcast %c0_i32_4 : i32 to vector<4x256xi32>
    %31 = arith.cmpi ne, %29, %30 : vector<4x256xi32>
    %c0_i32_5 = arith.constant 0 : i32
    %32 = vector.broadcast %c0_i32_5 : i32 to vector<4x256xi32>
    %33 = arith.cmpi slt, %29, %32 : vector<4x256xi32>
    %c0_i32_6 = arith.constant 0 : i32
    %34 = arith.cmpi slt, %27, %c0_i32_6 : i32
    %35 = vector.broadcast %34 : i1 to vector<4x256xi1>
    %36 = vector.broadcast %35 : vector<4x256xi1> to vector<4x256xi1>
    %37 = arith.xori %33, %36 : vector<4x256xi1>
    %38 = arith.andi %37, %31 : vector<4x256xi1>
    %39 = vector.broadcast %27 : i32 to vector<4x256xi32>
    %40 = arith.addi %29, %39 : vector<4x256xi32>
    %41 = arith.select %38, %40, %29 : vector<4x256xi1>, vector<4x256xi32>
    %c14_i32 = arith.constant 14 : i32
    %42 = vector.broadcast %c14_i32 : i32 to vector<4x256xi32>
    %43 = arith.cmpi slt, %41, %42 : vector<4x256xi32>
    %c224_i32 = arith.constant 224 : i32
    %44 = vector.broadcast %c224_i32 : i32 to vector<4x256xi32>
    %45 = arith.cmpi slt, %25, %44 : vector<4x256xi32>
    %46 = arith.andi %43, %45 : vector<4x256xi1>
    %47 = math.absf %24 : vector<4x256xf32>
    %cst_7 = arith.constant 0.000000e+00 : f32
    %48 = vector.broadcast %cst_7 : f32 to vector<4x256xf32>
    %49 = arith.select %46, %47, %48 : vector<4x256xi1>, vector<4x256xf32>
    %cst_8 = arith.constant dense<0.000000e+00> : vector<4xf32>
    %50 = vector.multi_reduction <add>, %49, %cst_8 [1] : vector<4x256xf32> to vector<4xf32>
    %51 = vector.shape_cast %50 : vector<4xf32> to vector<1x1x4xf32>
    %c0_9 = arith.constant 0 : index
    %c0_10 = arith.constant 0 : index
    %c0_11 = arith.constant 0 : index
    %52 = vector.load %arg3[%c0_9, %c0_10, %c0_11] : memref<1x1x4xf32, #tpu.memory_space<vmem>>, vector<1x1x4xf32>
    tpu.vector_store %arg3[%c0_9, %c0_10, %c0_11], %51 {strides = array<i32>} : memref<1x1x4xf32, #tpu.memory_space<vmem>>, vector<1x1x4xf32>,
    return
  }
  func.func @transform_0(%arg0: i32, %arg1: i32) -> (i32, i32, i32) {
    %c0_i32 = arith.constant 0 : i32
    %c0_i32_0 = arith.constant 0 : i32
    return %arg0, %arg1, %c0_i32 : i32, i32, i32
  }
  func.func @transform_1(%arg0: i32, %arg1: i32) -> (i32, i32, i32) {
    %c0_i32 = arith.constant 0 : i32
    %c0_i32_0 = arith.constant 0 : i32
    return %arg0, %c0_i32, %arg1 : i32, i32, i32
  }
}

</mosaic_0001>

<llo_original>
// kernel: tpu_custom_call.1
$region0: #{tpu_custom_call.1}
  #allocation0 [shape = 'u32[]', space=smem, size = 0x4, offset = 0x4, fixed_abs, tag = 'smem constant byte address 0x4 - core index']
  #allocation1 [shape = 'u32[72,128]{1,0:T(1,128)}', space=vmem, size = 0x9000, scoped, tag = 'internal scratch']
  %s0 = inlined_call_operand.hbm [shape: f32[2,4,256], index: 0, kind: input, shape index: {}]
  %s1 = inlined_call_operand.hbm [shape: f32[2,1,4], index: 1, kind: output, shape index: {}]
  %s2 = sld [smem:[#allocation0]]
  $region41: #{tpu_custom_call.1} parent=0
    _
  %s4 = ssub.s32 1, %s2
  %s5 = scalar_select 0, %s4, %s2
  $region1: #{tpu_custom_call.1} parent=0
    #allocation2 [shape = 'u8[8192]{0}', space=vmem, size = 0x2000, scoped, tag = 'input window, operand 0']
    #allocation3 [shape = 's32[2]{0}', space=sflag, size = 0x8, scoped, tag = 'scoped memory for tpu_custom_call.1']
    #allocation4 [shape = 's32[2]{0}', space=sflag, size = 0x8, scoped, tag = 'scoped memory for tpu_custom_call.1']
    #allocation5 [shape = 'u8[1024]{0}', space=vmem, size = 0x400, scoped, tag = 'output window, operand 0']
    %6 = vsyncpa [#allocation3], 0
    %s7 = scalar_lea.sflag [#allocation3], 1
    %8 = vsyncpa %s7, 0
    %9 = vsyncpa [#allocation4], 0
    %s10 = scalar_lea.sflag [#allocation4], 1
    %11 = vsyncpa %s10, 0
    loop: start=0, step=1, limit=4
    $region2: #{tpu_custom_call.1} parent=1 // loop_pre_header
      _
    $region3: #{tpu_custom_call.1} parent=1 // loop_header
      %s13 = sphi 0, %s17
      %p14 = scmp.ge.s32.totalorder %s13, 4
      %s20 = sphi 0, %s32
      %s21 = sphi 0, %s28
      %s22 = sphi 0, %s20
      %s23 = sphi 0, %s21
      %s24 = sphi 0, %s22
      %s25 = sphi 0, %s23
      %s37 = sphi 0, %s39
      %s40 = sphi 0, %s37
      %s41 = sphi 0, %s40
      %s57 = sphi 0, %s41
      %s65 = sphi 0, %s67
      %s68 = sphi 0, %s65
      %s69 = sphi 0, %s68
      %s85 = sphi 0, %s69
    $region4: #{tpu_custom_call.1} parent=1 // loop_header_branch
      %16 = sbr.rel (%p14) target = $region8
    $region5: #{tpu_custom_call.1} parent=1 // loop_body
      %s18 = ssub.s32 %s13, 1
      %s19 = ssub.s32 %s13, 2
      %s26 = sadd.s32 1, %s21
      %p27 = scmp.ge.s32.totalorder %s26, 1
      %s28 = scalar_select %p27, 0, %s26
      %s29 = sadd.s32 1, %s20
      %s30 = scalar_select %p27, %s29, %s20
      %p31 = scmp.ge.s32.totalorder %s30, 2
      %s32 = scalar_select %p31, 0, %s30
      %s33 = ssub.s32 %s20, %s32
      %s34 = ssub.s32 %s21, %s28
      %s35 = sor.u32 %s33, %s34
      %p36 = scmp.eq.s32.totalorder %s35, 0
      %s38 = sadd.s32 %s37, 1
      %s39 = scalar_select %p36, %s37, %s38
      %p42 = pneg %p36
      %p43 = scmp.eq.s32.totalorder %s13, 1
      %p44 = por %p42, %p43
      %p45 = scmp.ne.s32.totalorder %s37, %s40
      %p46 = scmp.eq.s32.totalorder %s13, 0
      %p47 = por %p45, %p46
      %p48 = scmp.ne.s32.totalorder %s37, %s40
      %p49 = scmp.eq.s32.totalorder %s18, 1
      %p50 = por %p48, %p49
      %p51 = scmp.ne.s32.totalorder %s40, %s41
      %p52 = scmp.eq.s32.totalorder %s18, 0
      %p53 = por %p51, %p52
      %p54 = scmp.ne.s32.totalorder %s40, %s41
      %p55 = scmp.eq.s32.totalorder %s19, 1
      %p56 = por %p54, %p55
      %p58 = scmp.ne.s32.totalorder %s41, %s57
      %p59 = scmp.eq.s32.totalorder %s19, 0
      %p60 = por %p58, %p59
      %s61 = ssub.s32 %s20, %s32
      %s62 = ssub.s32 %s21, %s28
      %s63 = sor.u32 %s61, %s62
      %p64 = scmp.eq.s32.totalorder %s63, 0
      %s66 = sadd.s32 %s65, 1
      %s67 = scalar_select %p64, %s65, %s66
      %p70 = pneg %p64
      %p71 = scmp.eq.s32.totalorder %s13, 1
      %p72 = por %p70, %p71
      %p73 = scmp.ne.s32.totalorder %s65, %s68
      %p74 = scmp.eq.s32.totalorder %s13, 0
      %p75 = por %p73, %p74
      %p76 = scmp.ne.s32.totalorder %s65, %s68
      %p77 = scmp.eq.s32.totalorder %s18, 1
      %p78 = por %p76, %p77
      %p79 = scmp.ne.s32.totalorder %s68, %s69
      %p80 = scmp.eq.s32.totalorder %s18, 0
      %p81 = por %p79, %p80
      %p82 = scmp.ne.s32.totalorder %s68, %s69
      %p83 = scmp.eq.s32.totalorder %s19, 1
      %p84 = por %p82, %p83
      %p86 = scmp.ne.s32.totalorder %s69, %s85
      %p87 = scmp.eq.s32.totalorder %s19, 0
      %p88 = por %p86, %p87
      %p89 = scmp.le.s32.totalorder 1, %s13
      %p90 = scmp.lt.s32.totalorder %s13, 3
      %p91 = pnand %p89, %p90
      %p92 = pneg %p91
      // Predicated region
      $region9: #{tpu_custom_call.1} parent=5 // pred_check
        _
      $region10: #{tpu_custom_call.1} parent=5 // pred_check_branch
        %94 = sbr.rel (%p91) target = $region12
      $region11: #{tpu_custom_call.1} parent=5 // pred_region
        %s95 = ssub.s32 %s13, 1
      $region12: #{tpu_custom_call.1} parent=5 // pred_fallthru
        _
      %p96 = scmp.lt.s32.totalorder %s13, 2
      // Predicated region
      $region13: #{tpu_custom_call.1} parent=5 // pred_check
        %p97 = pneg %p96
      $region14: #{tpu_custom_call.1} parent=5 // pred_check_branch
        %99 = sbr.rel (%p97) target = $region16
      $region15: #{tpu_custom_call.1} parent=5 // pred_region
        // Predicated region
        $region17: #{tpu_custom_call.1} parent=15 // pred_check
          %p100 = pneg %p47
        $region18: #{tpu_custom_call.1} parent=15 // pred_check_branch
          %102 = sbr.rel (%p100) target = $region20
        $region19: #{tpu_custom_call.1} parent=15 // pred_region
          %s103 = sand.u32 %s37, 1
          %s104 = scalar_lea.sflag [#allocation3], %s103
          %s105 = sand.u32 %s37, 1
          %s106 = smul.addr %s105, 8
          %s107 = scalar_lea.vmem [#allocation2], %s106
          %109 = vsyncadd %s104, 0
          %s110 = smul.addr %s21, 2
          %s111 = smul.addr %s20, 2
          %s112 = sadd.s32 %s110, %s111
          %s113 = smul.addr %s112, 4
          %s114 = scalar_lea.hbm %s0, %s113
          %s116 = sshll.u32 %s114, 4
          %s117 = int_to_ptr.hbm [resolvable:$true] %s116
          %s118 = sshll.u32 %s107, 4
          %s119 = int_to_ptr.vmem [resolvable:$true] %s118
          %121 = dma.hbm_to_vmem [thread:$0]  %s117, 128, %s119, %s104
        $region20: #{tpu_custom_call.1} parent=15 // pred_fallthru
          _
      $region16: #{tpu_custom_call.1} parent=5 // pred_fallthru
        _
      %p122 = scmp.le.s32.totalorder 1, %s13
      %p123 = scmp.lt.s32.totalorder %s13, 3
      %p124 = pnand %p122, %p123
      %p125 = pneg %p124
      // Predicated region
      $region21: #{tpu_custom_call.1} parent=5 // pred_check
        _
      $region22: #{tpu_custom_call.1} parent=5 // pred_check_branch
        %127 = sbr.rel (%p124) target = $region24
      $region23: #{tpu_custom_call.1} parent=5 // pred_region
        %s128 = ssub.s32 %s13, 1
        %s129 = sand.u32 %s40, 1
        %s130 = scalar_lea.sflag [#allocation3], %s129
        %s131 = sand.u32 %s40, 1
        %s132 = smul.addr %s131, 8
        %s133 = scalar_lea.vmem [#allocation2], %s132
        // Predicated region
        $region25: #{tpu_custom_call.1} parent=23 // pred_check
          %p134 = pneg %p53
        $region26: #{tpu_custom_call.1} parent=23 // pred_check_branch
          %136 = sbr.rel (%p134) target = $region28
        $region27: #{tpu_custom_call.1} parent=23 // pred_region
          %138 = dma.done %s130, 128
        $region28: #{tpu_custom_call.1} parent=23 // pred_fallthru
          _
        %s139 = sand.u32 %s40, 1
        %s140 = scalar_lea.sflag [#allocation3], %s139
        %s141 = sand.u32 %s40, 1
        %s142 = smul.addr %s141, 8
        %s143 = scalar_lea.vmem [#allocation2], %s142
        %p144 = pneg %p53
        %p145 = pneg %p50
        %p146 = pneg %p81
        %p147 = pneg %p78
        %s148 = sand.u32 %s68, 1
        %s149 = scalar_lea.sflag [#allocation4], %s148
        %s150 = sand.u32 %s68, 1
        %s151 = scalar_lea.vmem [#allocation5], %s150
        %v152 = vld [vmem:[%s133] sm:$0xff]
        %154 = vst [vmem:[#allocation1] ss:$2 sm:$0xff] %v152
        %v155 = vld.sshfl [vmem:[#allocation1] sm:$0xff pattern:$0x75316420]
        %v156 = vld.sshfl [vmem:[#allocation1 + $0x8] sm:$0xff pattern:$0x75316420]
        %157 = vrot.lane.b32.xlu0 %v155, 127
        %v158 = vpop.permute.xlu0 %157
        %159 = vrot.lane.b32.xlu0 %v156, 127
        %v160 = vpop.permute.xlu0 %159
        %vm161 = vcmask 1039360
        %v162 = vsel %vm161, %v158, %v160
        %165 = vst [vmem:[#allocation1] ss:$2 sm:$0xff] %v152
        %v166 = vld.sshfl [vmem:[#allocation1] sm:$0xff pattern:$0x75316420]
        %167 = vrot.lane.b32.xlu0 %v166, 127
        %v168 = vpop.permute.xlu0 %167
        %v170 = vsel %vm161, %v160, %v168
        %171 = vst [vmem:[#allocation1] ss:$2 sm:$0xff] %v152
        %v172 = vld.sshfl [vmem:[#allocation1] sm:$0xff pattern:$0x75316420]
        %v173 = vld.sshfl [vmem:[#allocation1 + $0x8] sm:$0xff pattern:$0x75316420]
        %174 = vrot.lane.b32.xlu0 %v172, 126
        %v175 = vpop.permute.xlu0 %174
        %176 = vrot.lane.b32.xlu0 %v173, 126
        %v177 = vpop.permute.xlu0 %176
        %vm178 = vcmask 1031168
        %v179 = vsel %vm178, %v175, %v177
        %181 = vst [vmem:[#allocation1] ss:$2 sm:$0xff] %v152
        %v182 = vld.sshfl [vmem:[#allocation1] sm:$0xff pattern:$0x75316420]
        %183 = vrot.lane.b32.xlu0 %v182, 126
        %v184 = vpop.permute.xlu0 %183
        %v186 = vsel %vm178, %v177, %v184
        %v188 = vrot.slane %v186, 4
        %vm189 = vcmask 1043456
        %v190 = vsel %vm189, %v179, %v188
        %v192 = vadd.f32 %v152, %v190
        %v193 = vmul.f32 %v162, 0.3125
        %v194 = vmul.f32 %v170, 0.3125
        %v195 = vmul.f32 %v192, 0.0625
        %197 = vst [vmem:[#allocation1] ss:$2 sm:$0xff] %v195
        %v198 = vld.sshfl [vmem:[#allocation1] sm:$0xff pattern:$0x75316420]
        %v199 = vld.sshfl [vmem:[#allocation1 + $0x8] sm:$0xff pattern:$0x75316420]
        %v202 = vsub.f32 %v193, %v198
        %v203 = vsub.f32 %v194, %v199
        %v204 = vmul.f32 %v192, 0.3125
        %v206 = vrot.slane %v170, 4
        %v207 = vsel %vm189, %v162, %v206
        %v209 = vsub.f32 %v204, %v207
        %212 = vrot.lane.b32.xlu0 %v202, 96
        %v213 = vpop.permute.xlu0 %212
        %214 = vrot.lane.b32.xlu0 %v203, 96
        %v215 = vpop.permute.xlu0 %214
        %vm216 = vcmask 785408
        %v217 = vsel %vm216, %v213, %v215
        %v221 = vsel %vm216, %v215, %v213
        %v222 = vadd.f32 %v202, %v217
        %v223 = vadd.f32 %v203, %v221
        %225 = vst [vmem:[#allocation1] ss:$2 sm:$0xff] %v209
        %v226 = vld.sshfl [vmem:[#allocation1] sm:$0xff pattern:$0x75316420]
        %v227 = vld.sshfl [vmem:[#allocation1 + $0x8] sm:$0xff pattern:$0x75316420]
        %228 = vrot.lane.b32.xlu0 %v226, 112
        %v229 = vpop.permute.xlu0 %228
        %230 = vrot.lane.b32.xlu0 %v227, 112
        %v231 = vpop.permute.xlu0 %230
        %vm232 = vcmask 916480
        %v233 = vsel %vm232, %v229, %v231
        %236 = vst [vmem:[#allocation1] ss:$2 sm:$0xff] %v209
        %v237 = vld.sshfl [vmem:[#allocation1] sm:$0xff pattern:$0x75316420]
        %238 = vrot.lane.b32.xlu0 %v237, 112
        %v239 = vpop.permute.xlu0 %238
        %v241 = vsel %vm232, %v231, %v239
        %v242 = vadd.f32 %v222, %v233
        %v243 = vadd.f32 %v223, %v241
        %v244 = vlaneseq
        %v245 = vand.u32 %v244, 127
        %v246 = vadd.s32 %v245, 128
        %vm247 = vcmp.lt.s32.totalorder %v245, 0
        %v248 = vsub.s32 0, %v245
        %v249 = vsel %vm247, %v248, %v245
        %v250 = vshrl.u32 %v249, 4
        %v251 = vand.u32 %v249, 15
        %v252 = vsub.s32 0, %v251
        %v253 = vsel %vm247, %v252, %v251
        %vm254 = vcmp.lt.s32.totalorder %v246, 0
        %v255 = vsub.s32 0, %v246
        %v256 = vsel %vm254, %v255, %v246
        %v257 = vshrl.u32 %v256, 4
        %v258 = vand.u32 %v256, 15
        %v259 = vsub.s32 0, %v258
        %v260 = vsel %vm254, %v259, %v258
        %vm261 = vcmp.ne.s32.totalorder %v253, 0
        %vm262 = vcmp.ne.s32.totalorder %v260, 0
        %vm263 = vcmp.lt.s32.totalorder %v253, 0
        %vm264 = vcmp.lt.s32.totalorder %v260, 0
        %vm265 = vmand %vm263, %vm261
        %vm266 = vmand %vm264, %vm262
        %v267 = vadd.s32 %v253, 16
        %v268 = vadd.s32 %v260, 16
        %v269 = vsel %vm265, %v267, %v253
        %v270 = vsel %vm266, %v268, %v260
        %vm271 = vcmp.lt.s32.totalorder %v269, 14
        %vm272 = vcmp.lt.s32.totalorder %v270, 14
        %vm273 = vcmp.lt.s32.totalorder %v245, 224
        %vm274 = vcmp.lt.s32.totalorder %v246, 224
        %vm275 = vmand %vm271, %vm273
        %vm276 = vmand %vm272, %vm274
        %v277 = vand.u32 2147483647, %v242
        %v278 = vand.u32 2147483647, %v243
        %v279 = vsel %vm275, %v277, 0.0
        %v280 = vsel %vm276, %v278, 0.0
        %v281 = vsel %vm189, %v279, 0.0
        %v282 = vsel %vm189, %v280, 0.0
        %v283 = vadd.f32 %v281, %v282
        %284 = vadd.xlane.f32.xlu0 %v283
        %v285 = vpop.xlane.xlu0 %284
        %v287 = vperm.slane %v285, %v245
        %vm289 = vcmask 24576
        %290 = vst.msk [vmem:[%s151] sm:$0x1] %vm289, %v287
        %s291 = sand.u32 %s68, 1
        %s292 = scalar_lea.sflag [#allocation4], %s291
        %s293 = sand.u32 %s68, 1
        %s294 = scalar_lea.vmem [#allocation5], %s293
        // Predicated region
        $region29: #{tpu_custom_call.1} parent=23 // pred_check
          %p295 = pneg %p78
        $region30: #{tpu_custom_call.1} parent=23 // pred_check_branch
          %297 = sbr.rel (%p295) target = $region32
        $region31: #{tpu_custom_call.1} parent=23 // pred_region
          %299 = vsyncadd %s292, 0
          %s300 = sadd.s32 %s23, %s22
          %s301 = scalar_lea.hbm %s1, %s300
          %s303 = sshll.u32 %s294, 4
          %s304 = int_to_ptr.vmem [resolvable:$true] %s303
          %s305 = sshll.u32 %s301, 4
          %s306 = int_to_ptr.hbm [resolvable:$true] %s305
          %308 = dma.vmem_to_hbm [thread:$0]  %s304, 16, %s306, %s292
        $region32: #{tpu_custom_call.1} parent=23 // pred_fallthru
          _
      $region24: #{tpu_custom_call.1} parent=5 // pred_fallthru
        _
      %p309 = scmp.le.s32.totalorder 2, %s13
      // Predicated region
      $region33: #{tpu_custom_call.1} parent=5 // pred_check
        %p310 = pneg %p309
      $region34: #{tpu_custom_call.1} parent=5 // pred_check_branch
        %312 = sbr.rel (%p310) target = $region36
      $region35: #{tpu_custom_call.1} parent=5 // pred_region
        %s313 = ssub.s32 %s13, 2
        // Predicated region
        $region37: #{tpu_custom_call.1} parent=35 // pred_check
          %p314 = pneg %p84
        $region38: #{tpu_custom_call.1} parent=35 // pred_check_branch
          %316 = sbr.rel (%p314) target = $region40
        $region39: #{tpu_custom_call.1} parent=35 // pred_region
          %s317 = sand.u32 %s69, 1
          %s318 = scalar_lea.sflag [#allocation4], %s317
          %s319 = sand.u32 %s69, 1
          %s320 = scalar_lea.vmem [#allocation5], %s319
          %322 = dma.done %s318, 16
        $region40: #{tpu_custom_call.1} parent=35 // pred_fallthru
          _
      $region36: #{tpu_custom_call.1} parent=5 // pred_fallthru
        _
    $region6: #{tpu_custom_call.1} parent=1 // loop_footer
      %s17 = sadd.s32 1, %s13
    $region7: #{tpu_custom_call.1} parent=1 // loop_footer_branch
      %12 = sbr.rel target = $region3
    $region8: #{tpu_custom_call.1} parent=1 // loop_exit
      _
    %323 = vsyncpa [#allocation3], 1
    %s324 = scalar_lea.sflag [#allocation3], 1
    %325 = vsyncpa %s324, 1
    %326 = vsyncpa [#allocation4], 1
    %s327 = scalar_lea.sflag [#allocation4], 1
    %328 = vsyncpa %s327, 1

</llo_original>
